<compile_context>
chip_gen: v7x
topology: tpu7x:2x2x1
jax: 0.10.0
libtpu: 0.0.40
codegen_flags: <defaults>
</compile_context>

<pallas_src>
import jax
import jax.numpy as jnp
import numpy as np
from jax import lax
from jax.experimental import pallas as pl
from jax.experimental.pallas import tpu as pltpu


def fcc_kernel(x_ref, w_ref, b_ref, o_ref):
    # x_ref: (B, Cin)        rows of the flattened batch for this grid step
    # w_ref: (Cout_p, Cin)   weight in PyTorch layout (no wrapper transpose)
    # b_ref: (1, Cout_p)     bias
    # o_ref: (B, Cout_p)     sigmoid(x @ W^T + b)
    y = lax.dot_general(
        x_ref[...], w_ref[...],
        dimension_numbers=(((1,), (1,)), ((), ())),   # contract last dims: x @ W^T
        preferred_element_type=jnp.float32,           # f32 accumulation on MXU
    )
    y = y + b_ref[...].astype(jnp.float32)            # bias add + sigmoid in f32
    o_ref[...] = jax.nn.sigmoid(y).astype(o_ref.dtype)


def _pick_block_rows(m, cin, cout_p, itemsize, *, max_block_rows=1024,
                     vmem_budget_bytes=16 * 1024 * 1024):
    """Largest row block that (a) gives >=2 grid steps (keeps both v7x TCs fed,
    neutral on v5e/v6e), (b) is a sublane multiple of 8, and (c) fits a
    conservative VMEM budget assuming default double-buffering of every block
    (safe on v7x's smaller 64 MiB VMEM without raising vmem_limit_bytes)."""
    block = min(max_block_rows, pl.cdiv(m, 2))
    block = max(8, ((block + 7) // 8) * 8)

    def footprint(b):
        # double-buffered x and out blocks + double-buffered weight + bias
        return (2 * b * (cin + cout_p) * itemsize
                + 2 * cout_p * cin * itemsize
                + 2 * cout_p * itemsize)

    while block > 8 and footprint(block) > vmem_budget_bytes:
        block -= 8
    return block


def fcc_forward(x, weight, bias, *, block_rows=None):
    """sigmoid(x @ weight.T + bias) with PyTorch nn.Linear parameter layout.

    x:      (..., Cin)   any float dtype (bf16 halves HBM traffic; accum is f32)
    weight: (Cout, Cin)  PyTorch layout, consumed directly (no transpose pass)
    bias:   (Cout,)
    """
    orig_shape = x.shape
    cin = orig_shape[-1]
    cout = weight.shape[0]

    # Flatten leading dims into one row axis (nn.Linear semantics). reshape of
    # leading dims is layout-preserving -> no extra HBM pass. No dtype cast.
    x2 = x.reshape(-1, cin)
    m = x2.shape[0]
    itemsize = jnp.dtype(x2.dtype).itemsize

    # Lane-density guard: pad Cout up to a multiple of 128 so output stores are
    # unmasked. Skipped when already lane-dense (demo: Cout=128).
    cout_p = pl.cdiv(cout, 128) * 128
    if cout_p != cout:
        weight = jnp.pad(weight, ((0, cout_p - cout), (0, 0)))
        bias = jnp.pad(bias, (0, cout_p - cout))
    b2 = bias.reshape(1, cout_p)

    if block_rows is None:
        block_rows = _pick_block_rows(m, cin, cout_p, itemsize)
    num_blocks = pl.cdiv(m, block_rows)   # ragged last block handled by Pallas

    cost = pl.CostEstimate(
        flops=2 * m * cin * cout_p,
        transcendentals=m * cout_p,
        bytes_accessed=(m * cin + cout_p * cin + cout_p + m * cout_p) * itemsize,
    )

    out = pl.pallas_call(
        fcc_kernel,
        out_shape=jax.ShapeDtypeStruct((m, cout_p), x2.dtype),
        grid_spec=pltpu.PrefetchScalarGridSpec(
            num_scalar_prefetch=0,
            grid=(num_blocks,),
            in_specs=[
                pl.BlockSpec((block_rows, cin), lambda i: (i, 0)),
                pl.BlockSpec((cout_p, cin), lambda i: (0, 0)),   # resident weight
                pl.BlockSpec((1, cout_p), lambda i: (0, 0)),     # resident bias
            ],
            out_specs=pl.BlockSpec((block_rows, cout_p), lambda i: (i, 0)),
        ),
        compiler_params=pltpu.CompilerParams(
            dimension_semantics=("parallel",)),   # shard row blocks over v7x's 2 TCs
        cost_estimate=cost,
    )(x2, weight, b2)

    if cout_p != cout:
        out = out[:, :cout]
    return out.reshape(*orig_shape[:-1], cout)


def reference_forward(x, weight, bias):
    """Plain-JAX reference of the same math (for correctness check)."""
    return jax.nn.sigmoid(jnp.einsum("...i,oi->...o", x, weight) + bias)


if __name__ == "__main__":
    # Small shapes consistent with the module: a batch of 400 feature vectors,
    # in_channels=64, out_channels=128 (lane-dense output width).
    M, CIN, COUT = 400, 64, 128

    key = jax.random.PRNGKey(0)
    k_x, k_w, k_b = jax.random.split(key, 3)

    x = jax.random.normal(k_x, (M, CIN), jnp.float32)
    # PyTorch nn.Linear default init ranges (deterministic via PRNGKey(0)).
    lim = 1.0 / np.sqrt(CIN)
    weight = jax.random.uniform(k_w, (COUT, CIN), jnp.float32, -lim, lim)
    bias = jax.random.uniform(k_b, (COUT,), jnp.float32, -lim, lim)

    out = fcc_forward(x, weight, bias)   # block_rows auto -> 200 rows, 2 grid steps
    out = jax.block_until_ready(out)

    ref = reference_forward(x, weight, bias)
    assert out.shape == (M, COUT)
    np.testing.assert_allclose(np.asarray(out), np.asarray(ref),
                               rtol=1e-5, atol=1e-5)
    print("KERNEL_OK")
</pallas_src>

<mosaic_0001>
module attributes {stable_mosaic.version = 11 : i64} {
  func.func @fcc_kernel(%arg0: i32, %arg1: memref<200x64xf32, #tpu.memory_space<vmem>>, %arg2: memref<128x64xf32, #tpu.memory_space<vmem>>, %arg3: memref<1x128xf32, #tpu.memory_space<vmem>>, %arg4: memref<200x128xf32, #tpu.memory_space<vmem>>) attributes {dimension_semantics = [#tpu.dimension_semantics<parallel>], iteration_bounds = array<i64: 2>, scalar_prefetch = 0 : i64, scratch_operands = 0 : i64, tpu.core_type = #tpu.core_type<tc>, window_params = [{transform_indices = @transform_0, window_bounds = array<i64: 200, 64>}, {pipeline_mode = #tpu.pipeline_mode<synchronous>, transform_indices = @transform_1, window_bounds = array<i64: 128, 64>}, {pipeline_mode = #tpu.pipeline_mode<synchronous>, transform_indices = @transform_2, window_bounds = array<i64: 1, 128>}, {transform_indices = @transform_3, window_bounds = array<i64: 200, 128>}]} {
    %c0 = arith.constant 0 : index
    %c0_0 = arith.constant 0 : index
    %0 = vector.load %arg1[%c0, %c0_0] : memref<200x64xf32, #tpu.memory_space<vmem>>, vector<200x64xf32>
    %c0_1 = arith.constant 0 : index
    %c0_2 = arith.constant 0 : index
    %1 = vector.load %arg2[%c0_1, %c0_2] : memref<128x64xf32, #tpu.memory_space<vmem>>, vector<128x64xf32>
    %cst = arith.constant dense<0.000000e+00> : vector<200x128xf32>
    %2 = tpu.matmul %0, %1, %cst {dimension_numbers = #tpu.dot_dimension_numbers<[1], [1], [0], [0], [0, 0, 1, 0], [], []>} : vector<200x64xf32>, vector<128x64xf32>, vector<200x128xf32> -> vector<200x128xf32>
    %c0_3 = arith.constant 0 : index
    %c0_4 = arith.constant 0 : index
    %3 = vector.load %arg3[%c0_3, %c0_4] : memref<1x128xf32, #tpu.memory_space<vmem>>, vector<1x128xf32>
    %4 = vector.broadcast %3 : vector<1x128xf32> to vector<200x128xf32>
    %5 = arith.addf %2, %4 : vector<200x128xf32>
    %6 = arith.negf %5 : vector<200x128xf32>
    %7 = math.exp %6 : vector<200x128xf32>
    %cst_5 = arith.constant 1.000000e+00 : f32
    %8 = vector.broadcast %cst_5 : f32 to vector<200x128xf32>
    %9 = arith.addf %8, %7 : vector<200x128xf32>
    %10 = arith.divf %8, %9 : vector<200x128xf32>
    %c0_6 = arith.constant 0 : index
    %c0_7 = arith.constant 0 : index
    %11 = vector.load %arg4[%c0_6, %c0_7] : memref<200x128xf32, #tpu.memory_space<vmem>>, vector<200x128xf32>
    tpu.vector_store %arg4[%c0_6, %c0_7], %10 {strides = array<i32>} : memref<200x128xf32, #tpu.memory_space<vmem>>, vector<200x128xf32>,
    return
  }
  func.func @transform_0(%arg0: i32) -> (i32, i32) {
    %c0_i32 = arith.constant 0 : i32
    %c0_i32_0 = arith.constant 0 : i32
    return %arg0, %c0_i32 : i32, i32
  }
  func.func @transform_1(%arg0: i32) -> (i32, i32) {
    %c0_i32 = arith.constant 0 : i32
    %c0_i32_0 = arith.constant 0 : i32
    %c0_i32_1 = arith.constant 0 : i32
    return %c0_i32, %c0_i32_0 : i32, i32
  }
  func.func @transform_2(%arg0: i32) -> (i32, i32) {
    %c0_i32 = arith.constant 0 : i32
    %c0_i32_0 = arith.constant 0 : i32
    %c0_i32_1 = arith.constant 0 : i32
    return %c0_i32, %c0_i32_0 : i32, i32
  }
  func.func @transform_3(%arg0: i32) -> (i32, i32) {
    %c0_i32 = arith.constant 0 : i32
    %c0_i32_0 = arith.constant 0 : i32
    return %arg0, %c0_i32 : i32, i32
  }
}

</mosaic_0001>

<llo_original>
// kernel: tpu_custom_call.1
$region0: #{tpu_custom_call.1}
  #allocation0 [shape = 'u32[]', space=smem, size = 0x4, offset = 0x4, fixed_abs, tag = 'smem constant byte address 0x4 - core index']
  #allocation1 [shape = 'u32[144,128]{1,0:T(1,128)}', space=vmem, size = 0x12000, scoped, tag = 'internal scratch']
  %s0 = inlined_call_operand.vmem [shape: f32[400,64], index: 0, kind: input, shape index: {}]
  %s1 = inlined_call_operand.vmem [shape: f32[128,64], index: 1, kind: input, shape index: {}]
  %s2 = inlined_call_operand.vmem [shape: f32[1,128], index: 2, kind: input, shape index: {}]
  %s3 = inlined_call_operand.hbm [shape: f32[400,128], index: 3, kind: output, shape index: {}]
  %s4 = sld [smem:[#allocation0]]
  $region45: #{tpu_custom_call.1} parent=0
    _
  %s6 = ssub.s32 1, %s4
  %s7 = scalar_select 0, %s6, %s4
  $region1: #{tpu_custom_call.1} parent=0
    #allocation2 [shape = 'u8[204800]{0}', space=vmem, size = 0x32000, scoped, tag = 'output window, operand 0']
    #allocation3 [shape = 's32[2]{0}', space=sflag, size = 0x8, scoped, tag = 'scoped memory for tpu_custom_call.1']
    %8 = vsyncpa [#allocation3], 0
    %s9 = scalar_lea.sflag [#allocation3], 1
    %10 = vsyncpa %s9, 0
    loop: start=0, step=1, limit=4
    $region2: #{tpu_custom_call.1} parent=1 // loop_pre_header
      _
    $region3: #{tpu_custom_call.1} parent=1 // loop_header
      %s12 = sphi 0, %s16
      %p13 = scmp.ge.s32.totalorder %s12, 4
      %s22 = sphi 0, %s24
      %s25 = sphi 0, %s22
      %s26 = sphi 0, %s25
      %s42 = sphi 0, %s26
      %s46 = sphi 0, %s46
      %s48 = sphi 0, %s46
      %s49 = sphi 0, %s48
      %s63 = sphi 0, %s49
      %s67 = sphi 0, %s67
      %s69 = sphi 0, %s67
      %s70 = sphi 0, %s69
      %s84 = sphi 0, %s70
      %s90 = sphi 0, %s92
      %s93 = sphi 0, %s90
      %s94 = sphi 0, %s93
      %s110 = sphi 0, %s94
    $region4: #{tpu_custom_call.1} parent=1 // loop_header_branch
      %15 = sbr.rel (%p13) target = $region8
    $region5: #{tpu_custom_call.1} parent=1 // loop_body
      %s17 = ssub.s32 %s12, 1
      %s18 = ssub.s32 %s12, 2
      %s19 = sadd.s32 %s12, 1
      %s20 = ssub.s32 %s12, %s19
      %p21 = scmp.eq.s32.totalorder %s20, 0
      %s23 = sadd.s32 %s22, 1
      %s24 = scalar_select %p21, %s22, %s23
      %p27 = pneg %p21
      %p28 = scmp.eq.s32.totalorder %s12, 1
      %p29 = por %p27, %p28
      %p30 = scmp.ne.s32.totalorder %s22, %s25
      %p31 = scmp.eq.s32.totalorder %s12, 0
      %p32 = por %p30, %p31
      %p33 = scmp.ne.s32.totalorder %s22, %s25
      %p34 = scmp.eq.s32.totalorder %s17, 1
      %p35 = por %p33, %p34
      %p36 = scmp.ne.s32.totalorder %s25, %s26
      %p37 = scmp.eq.s32.totalorder %s17, 0
      %p38 = por %p36, %p37
      %p39 = scmp.ne.s32.totalorder %s25, %s26
      %p40 = scmp.eq.s32.totalorder %s18, 1
      %p41 = por %p39, %p40
      %p43 = scmp.ne.s32.totalorder %s26, %s42
      %p44 = scmp.eq.s32.totalorder %s18, 0
      %p45 = por %p43, %p44
      %s47 = sadd.s32 %s46, 1
      %p50 = scmp.eq.s32.totalorder %s12, 1
      %p51 = scmp.ne.s32.totalorder %s46, %s48
      %p52 = scmp.eq.s32.totalorder %s12, 0
      %p53 = por %p51, %p52
      %p54 = scmp.ne.s32.totalorder %s46, %s48
      %p55 = scmp.eq.s32.totalorder %s17, 1
      %p56 = por %p54, %p55
      %p57 = scmp.ne.s32.totalorder %s48, %s49
      %p58 = scmp.eq.s32.totalorder %s17, 0
      %p59 = por %p57, %p58
      %p60 = scmp.ne.s32.totalorder %s48, %s49
      %p61 = scmp.eq.s32.totalorder %s18, 1
      %p62 = por %p60, %p61
      %p64 = scmp.ne.s32.totalorder %s49, %s63
      %p65 = scmp.eq.s32.totalorder %s18, 0
      %p66 = por %p64, %p65
      %s68 = sadd.s32 %s67, 1
      %p71 = scmp.eq.s32.totalorder %s12, 1
      %p72 = scmp.ne.s32.totalorder %s67, %s69
      %p73 = scmp.eq.s32.totalorder %s12, 0
      %p74 = por %p72, %p73
      %p75 = scmp.ne.s32.totalorder %s67, %s69
      %p76 = scmp.eq.s32.totalorder %s17, 1
      %p77 = por %p75, %p76
      %p78 = scmp.ne.s32.totalorder %s69, %s70
      %p79 = scmp.eq.s32.totalorder %s17, 0
      %p80 = por %p78, %p79
      %p81 = scmp.ne.s32.totalorder %s69, %s70
      %p82 = scmp.eq.s32.totalorder %s18, 1
      %p83 = por %p81, %p82
      %p85 = scmp.ne.s32.totalorder %s70, %s84
      %p86 = scmp.eq.s32.totalorder %s18, 0
      %p87 = por %p85, %p86
      %s88 = ssub.s32 %s12, %s19
      %p89 = scmp.eq.s32.totalorder %s88, 0
      %s91 = sadd.s32 %s90, 1
      %s92 = scalar_select %p89, %s90, %s91
      %p95 = pneg %p89
      %p96 = scmp.eq.s32.totalorder %s12, 1
      %p97 = por %p95, %p96
      %p98 = scmp.ne.s32.totalorder %s90, %s93
      %p99 = scmp.eq.s32.totalorder %s12, 0
      %p100 = por %p98, %p99
      %p101 = scmp.ne.s32.totalorder %s90, %s93
      %p102 = scmp.eq.s32.totalorder %s17, 1
      %p103 = por %p101, %p102
      %p104 = scmp.ne.s32.totalorder %s93, %s94
      %p105 = scmp.eq.s32.totalorder %s17, 0
      %p106 = por %p104, %p105
      %p107 = scmp.ne.s32.totalorder %s93, %s94
      %p108 = scmp.eq.s32.totalorder %s18, 1
      %p109 = por %p107, %p108
      %p111 = scmp.ne.s32.totalorder %s94, %s110
      %p112 = scmp.eq.s32.totalorder %s18, 0
      %p113 = por %p111, %p112
      %p114 = scmp.le.s32.totalorder 1, %s12
      %p115 = scmp.lt.s32.totalorder %s12, 3
      %p116 = pnand %p114, %p115
      %p117 = pneg %p116
      // Predicated region
      $region9: #{tpu_custom_call.1} parent=5 // pred_check
        _
      $region10: #{tpu_custom_call.1} parent=5 // pred_check_branch
        %119 = sbr.rel (%p116) target = $region12
      $region11: #{tpu_custom_call.1} parent=5 // pred_region
        %s120 = ssub.s32 %s12, 1
        // Predicated region
        $region13: #{tpu_custom_call.1} parent=11 // pred_check
          %p121 = pneg %p59
        $region14: #{tpu_custom_call.1} parent=11 // pred_check_branch
          %123 = sbr.rel (%p121) target = $region16
        $region15: #{tpu_custom_call.1} parent=11 // pred_region
          _
        $region16: #{tpu_custom_call.1} parent=11 // pred_fallthru
          _
        // Predicated region
        $region17: #{tpu_custom_call.1} parent=11 // pred_check
          %p124 = pneg %p80
        $region18: #{tpu_custom_call.1} parent=11 // pred_check_branch
          %126 = sbr.rel (%p124) target = $region20
        $region19: #{tpu_custom_call.1} parent=11 // pred_region
          _
        $region20: #{tpu_custom_call.1} parent=11 // pred_fallthru
          _
      $region12: #{tpu_custom_call.1} parent=5 // pred_fallthru
        _
      %p127 = scmp.lt.s32.totalorder %s12, 2
      // Predicated region
      $region21: #{tpu_custom_call.1} parent=5 // pred_check
        %p128 = pneg %p127
      $region22: #{tpu_custom_call.1} parent=5 // pred_check_branch
        %130 = sbr.rel (%p128) target = $region24
      $region23: #{tpu_custom_call.1} parent=5 // pred_region
        // Predicated region
        $region25: #{tpu_custom_call.1} parent=23 // pred_check
          %p131 = pneg %p32
        $region26: #{tpu_custom_call.1} parent=23 // pred_check_branch
          %133 = sbr.rel (%p131) target = $region28
        $region27: #{tpu_custom_call.1} parent=23 // pred_region
          %s134 = smul.u32 25, %s12
          %p135 = scmp.lt.s32.totalorder %s134, 49
          %s136 = scalar_select %p135, %s134, 49
          %s137 = smul.addr %s136, 8
          %s138 = scalar_lea.vmem %s0, %s137
          %s139 = smul.u32 25, %s12
        $region28: #{tpu_custom_call.1} parent=23 // pred_fallthru
          _
      $region24: #{tpu_custom_call.1} parent=5 // pred_fallthru
        _
      %p140 = scmp.le.s32.totalorder 1, %s12
      %p141 = scmp.lt.s32.totalorder %s12, 3
      %p142 = pnand %p140, %p141
      %p143 = pneg %p142
      // Predicated region
      $region29: #{tpu_custom_call.1} parent=5 // pred_check
        _
      $region30: #{tpu_custom_call.1} parent=5 // pred_check_branch
        %145 = sbr.rel (%p142) target = $region32
      $region31: #{tpu_custom_call.1} parent=5 // pred_region
        %s146 = ssub.s32 %s12, 1
        %s147 = smul.u32 25, %s17
        %p148 = scmp.lt.s32.totalorder %s147, 49
        %s149 = scalar_select %p148, %s147, 49
        %s150 = smul.addr %s149, 8
        %s151 = scalar_lea.vmem %s0, %s150
        %p152 = pneg %p38
        %p153 = pneg %p35
        %p154 = pneg %p59
        %p155 = pneg %p56
        %p156 = pneg %p80
        %p157 = pneg %p77
        %p158 = pneg %p106
        %p159 = pneg %p103
        %s160 = sand.u32 %s93, 1
        %s161 = scalar_lea.sflag [#allocation3], %s160
        %s162 = sand.u32 %s93, 1
        %s163 = smul.addr %s162, 200
        %s164 = scalar_lea.vmem [#allocation2], %s163
        %s165 = smul.u32 25, %s17
        %p166 = scmp.lt.s32.totalorder %s165, 49
        %s167 = scalar_select %p166, %s165, 49
        %s168 = smul.addr %s167, 8
        %s169 = scalar_lea.vmem %s0, %s168
        %s170 = smul.u32 25, %s17
        %s171 = smul.u32 25, %s17
        %v172 = vld [vmem:[%s169] sm:$0xff]
        %v173 = vld [vmem:[%s169 + $0x8] sm:$0xff]
        %v174 = vld [vmem:[%s169 + $0x10] sm:$0xff]
        %v175 = vld [vmem:[%s169 + $0x18] sm:$0xff]
        %v176 = vld [vmem:[%s169 + $0x20] sm:$0xff]
        %v177 = vld [vmem:[%s169 + $0x28] sm:$0xff]
        %v178 = vld [vmem:[%s169 + $0x30] sm:$0xff]
        %v179 = vld [vmem:[%s169 + $0x38] sm:$0xff]
        %v180 = vld [vmem:[%s169 + $0x40] sm:$0xff]
        %v181 = vld [vmem:[%s169 + $0x48] sm:$0xff]
        %v182 = vld [vmem:[%s169 + $0x50] sm:$0xff]
        %v183 = vld [vmem:[%s169 + $0x58] sm:$0xff]
        %v184 = vld [vmem:[%s169 + $0x60] sm:$0xff]
        %v185 = vld [vmem:[%s169 + $0x68] sm:$0xff]
        %v186 = vld [vmem:[%s169 + $0x70] sm:$0xff]
        %v187 = vld [vmem:[%s169 + $0x78] sm:$0xff]
        %v188 = vld [vmem:[%s169 + $0x80] sm:$0xff]
        %v189 = vld [vmem:[%s169 + $0x88] sm:$0xff]
        %v190 = vld [vmem:[%s169 + $0x90] sm:$0xff]
        %v191 = vld [vmem:[%s169 + $0x98] sm:$0xff]
        %v192 = vld [vmem:[%s169 + $0xa0] sm:$0xff]
        %v193 = vld [vmem:[%s169 + $0xa8] sm:$0xff]
        %v194 = vld [vmem:[%s169 + $0xb0] sm:$0xff]
        %v195 = vld [vmem:[%s169 + $0xb8] sm:$0xff]
        %v196 = vld [vmem:[%s169 + $0xc0] sm:$0xff]
        %v197 = vld [vmem:[%s1] sm:$0xff]
        %v198 = vld [vmem:[%s1 + $0x8] sm:$0xff]
        %v199 = vld [vmem:[%s1 + $0x10] sm:$0xff]
        %v200 = vld [vmem:[%s1 + $0x18] sm:$0xff]
        %v201 = vld [vmem:[%s1 + $0x20] sm:$0xff]
        %v202 = vld [vmem:[%s1 + $0x28] sm:$0xff]
        %v203 = vld [vmem:[%s1 + $0x30] sm:$0xff]
        %v204 = vld [vmem:[%s1 + $0x38] sm:$0xff]
        %v205 = vld [vmem:[%s1 + $0x40] sm:$0xff]
        %v206 = vld [vmem:[%s1 + $0x48] sm:$0xff]
        %v207 = vld [vmem:[%s1 + $0x50] sm:$0xff]
        %v208 = vld [vmem:[%s1 + $0x58] sm:$0xff]
        %v209 = vld [vmem:[%s1 + $0x60] sm:$0xff]
        %v210 = vld [vmem:[%s1 + $0x68] sm:$0xff]
        %v211 = vld [vmem:[%s1 + $0x70] sm:$0xff]
        %v212 = vld [vmem:[%s1 + $0x78] sm:$0xff]
        %v213 = vld [vmem:[%s2] sm:$0x1]
        %v215 = vlaneseq
        %v216 = vshrl.u32 %v215, 7
        %v217 = vsub.s32 0, %v216
        %v218 = vrot.slane %v213, %v217
        %vm220 = vcmask 523264
        %v222 = vsel %vm220, %v172, 0
        %v225 = vsel %vm220, %v173, 0
        %v228 = vsel %vm220, %v174, 0
        %v231 = vsel %vm220, %v175, 0
        %v234 = vsel %vm220, %v176, 0
        %v237 = vsel %vm220, %v177, 0
        %v240 = vsel %vm220, %v178, 0
        %v243 = vsel %vm220, %v179, 0
        %v246 = vsel %vm220, %v180, 0
        %v249 = vsel %vm220, %v181, 0
        %v252 = vsel %vm220, %v182, 0
        %v255 = vsel %vm220, %v183, 0
        %v258 = vsel %vm220, %v184, 0
        %v261 = vsel %vm220, %v185, 0
        %v264 = vsel %vm220, %v186, 0
        %v267 = vsel %vm220, %v187, 0
        %v270 = vsel %vm220, %v188, 0
        %v273 = vsel %vm220, %v189, 0
        %v276 = vsel %vm220, %v190, 0
        %v279 = vsel %vm220, %v191, 0
        %v282 = vsel %vm220, %v192, 0
        %v285 = vsel %vm220, %v193, 0
        %v288 = vsel %vm220, %v194, 0
        %v291 = vsel %vm220, %v195, 0
        %v294 = vsel %vm220, %v196, 0
        %v297 = vsel %vm220, %v197, 0
        %v300 = vsel %vm220, %v198, 0
        %v303 = vsel %vm220, %v199, 0
        %v306 = vsel %vm220, %v200, 0
        %v309 = vsel %vm220, %v201, 0
        %v312 = vsel %vm220, %v202, 0
        %v315 = vsel %vm220, %v203, 0
        %v318 = vsel %vm220, %v204, 0
        %v321 = vsel %vm220, %v205, 0
        %v324 = vsel %vm220, %v206, 0
        %v327 = vsel %vm220, %v207, 0
        %v330 = vsel %vm220, %v208, 0
        %v333 = vsel %vm220, %v209, 0
        %v336 = vsel %vm220, %v210, 0
        %v339 = vsel %vm220, %v211, 0
        %v342 = vsel %vm220, %v212, 0
        %344 = vmatprep.subr.mxu0 0.0
        %345 = vmatpush1.xpose.msra.mxu0 %v297
        %346 = vmatprep.subr.mxu0 0.0
        %347 = vmatpush1.xpose.msra.mxu0 %v300
        %348 = vmatprep.subr.mxu0 0.0
        %349 = vmatpush1.xpose.msra.mxu0 %v303
        %350 = vmatprep.subr.mxu0 0.0
        %351 = vmatpush1.xpose.msra.mxu0 %v306
        %352 = vmatprep.subr.mxu0 0.0
        %353 = vmatpush1.xpose.msra.mxu0 %v309
        %354 = vmatprep.subr.mxu0 0.0
        %355 = vmatpush1.xpose.msra.mxu0 %v312
        %356 = vmatprep.subr.mxu0 0.0
        %357 = vmatpush1.xpose.msra.mxu0 %v315
        %358 = vmatprep.subr.mxu0 0.0
        %359 = vmatpush1.xpose.msra.mxu0 %v318
        %360 = vmatprep.subr.mxu0 0.0
        %361 = vmatpush1.xpose.msra.mxu0 %v321
        %362 = vmatprep.subr.mxu0 0.0
        %363 = vmatpush1.xpose.msra.mxu0 %v324
        %364 = vmatprep.subr.mxu0 0.0
        %365 = vmatpush1.xpose.msra.mxu0 %v327
        %366 = vmatprep.subr.mxu0 0.0
        %367 = vmatpush1.xpose.msra.mxu0 %v330
        %368 = vmatprep.subr.mxu0 0.0
        %369 = vmatpush1.xpose.msra.mxu0 %v333
        %370 = vmatprep.subr.mxu0 0.0
        %371 = vmatpush1.xpose.msra.mxu0 %v336
        %372 = vmatprep.subr.mxu0 0.0
        %373 = vmatpush1.xpose.msra.mxu0 %v339
        %374 = vmatprep.subr.mxu0 0.0
        %375 = vmatpush1.xpose.msra.mxu0 %v342
        %376 = vmatprep.subr.mxu0 0.0
        %377 = vmatpush1.xpose.msra.mxu0 0.0
        %378 = vmatprep.subr.mxu0 0.0
        %379 = vmatpush1.xpose.msra.mxu0 0.0
        %380 = vmatprep.subr.mxu0 0.0
        %381 = vmatpush1.xpose.msra.mxu0 0.0
        %382 = vmatprep.subr.mxu0 0.0
        %383 = vmatpush1.xpose.msra.mxu0 0.0
        %384 = vmatprep.subr.mxu0 0.0
        %385 = vmatpush1.xpose.msra.mxu0 0.0
        %386 = vmatprep.subr.mxu0 0.0
        %387 = vmatpush1.xpose.msra.mxu0 0.0
        %388 = vmatprep.subr.mxu0 0.0
        %389 = vmatpush1.xpose.msra.mxu0 0.0
        %390 = vmatprep.subr.mxu0 0.0
        %391 = vmatpush1.xpose.msra.mxu0 0.0
        %392 = vmatprep.subr.mxu0 0.0
        %393 = vmatpush1.xpose.msra.mxu0 0.0
        %394 = vmatprep.subr.mxu0 0.0
        %395 = vmatpush1.xpose.msra.mxu0 0.0
        %396 = vmatprep.subr.mxu0 0.0
        %397 = vmatpush1.xpose.msra.mxu0 0.0
        %398 = vmatprep.subr.mxu0 0.0
        %399 = vmatpush1.xpose.msra.mxu0 0.0
        %400 = vmatprep.subr.mxu0 0.0
        %401 = vmatpush1.xpose.msra.mxu0 0.0
        %402 = vmatprep.subr.mxu0 0.0
        %403 = vmatpush1.xpose.msra.mxu0 0.0
        %404 = vmatprep.subr.mxu0 0.0
        %405 = vmatpush1.xpose.msra.mxu0 0.0
        %406 = vmatprep.subr.mxu0 0.0
        %407 = vmatpush1.xpose.msra.mxu0 0.0
        %408 = vmatprep.mubr.f32.mxu0 0.0
        %409 = vmatmul.mubr.f32.gmra.mrb[0].mxu0 %v222
        %v410 = vpop.f32.mrb[0].mxu0
        %v411 = vadd.f32 %v218, %v410
        %v412 = vpop.f32.mrb[0].mxu0
        %413 = vmatprep.mubr.f32.mxu0 0.0
        %414 = vmatmul.mubr.f32.gmra.mrb[0].mxu0 %v225
        %v415 = vpop.f32.mrb[0].mxu0
        %v416 = vadd.f32 %v218, %v415
        %v417 = vpop.f32.mrb[0].mxu0
        %418 = vmatprep.mubr.f32.mxu0 0.0
        %419 = vmatmul.mubr.f32.gmra.mrb[0].mxu0 %v228
        %v420 = vpop.f32.mrb[0].mxu0
        %v421 = vadd.f32 %v218, %v420
        %v422 = vpop.f32.mrb[0].mxu0
        %423 = vmatprep.mubr.f32.mxu0 0.0
        %424 = vmatmul.mubr.f32.gmra.mrb[0].mxu0 %v231
        %v425 = vpop.f32.mrb[0].mxu0
        %v426 = vadd.f32 %v218, %v425
        %v427 = vpop.f32.mrb[0].mxu0
        %428 = vmatprep.mubr.f32.mxu0 0.0
        %429 = vmatmul.mubr.f32.gmra.mrb[0].mxu0 %v234
        %v430 = vpop.f32.mrb[0].mxu0
        %v431 = vadd.f32 %v218, %v430
        %v432 = vpop.f32.mrb[0].mxu0
        %433 = vmatprep.mubr.f32.mxu0 0.0
        %434 = vmatmul.mubr.f32.gmra.mrb[0].mxu0 %v237
        %v435 = vpop.f32.mrb[0].mxu0
        %v436 = vadd.f32 %v218, %v435
        %v437 = vpop.f32.mrb[0].mxu0
        %438 = vmatprep.mubr.f32.mxu0 0.0
        %439 = vmatmul.mubr.f32.gmra.mrb[0].mxu0 %v240
        %v440 = vpop.f32.mrb[0].mxu0
        %v441 = vadd.f32 %v218, %v440
        %v442 = vpop.f32.mrb[0].mxu0
        %443 = vmatprep.mubr.f32.mxu0 0.0
        %444 = vmatmul.mubr.f32.gmra.mrb[0].mxu0 %v243
        %v445 = vpop.f32.mrb[0].mxu0
        %v446 = vadd.f32 %v218, %v445
        %v447 = vpop.f32.mrb[0].mxu0
        %448 = vmatprep.mubr.f32.mxu0 0.0
        %449 = vmatmul.mubr.f32.gmra.mrb[0].mxu0 %v246
        %v450 = vpop.f32.mrb[0].mxu0
        %v451 = vadd.f32 %v218, %v450
        %v452 = vpop.f32.mrb[0].mxu0
        %453 = vmatprep.mubr.f32.mxu0 0.0
        %454 = vmatmul.mubr.f32.gmra.mrb[0].mxu0 %v249
        %v455 = vpop.f32.mrb[0].mxu0
        %v456 = vadd.f32 %v218, %v455
        %v457 = vpop.f32.mrb[0].mxu0
        %458 = vmatprep.mubr.f32.mxu0 0.0
        %459 = vmatmul.mubr.f32.gmra.mrb[0].mxu0 %v252
        %v460 = vpop.f32.mrb[0].mxu0
        %v461 = vadd.f32 %v218, %v460
        %v462 = vpop.f32.mrb[0].mxu0
        %463 = vmatprep.mubr.f32.mxu0 0.0
        %464 = vmatmul.mubr.f32.gmra.mrb[0].mxu0 %v255
        %v465 = vpop.f32.mrb[0].mxu0
        %v466 = vadd.f32 %v218, %v465
        %v467 = vpop.f32.mrb[0].mxu0
        %468 = vmatprep.mubr.f32.mxu0 0.0
        %469 = vmatmul.mubr.f32.gmra.mrb[0].mxu0 %v258
        %v470 = vpop.f32.mrb[0].mxu0
        %v471 = vadd.f32 %v218, %v470
        %v472 = vpop.f32.mrb[0].mxu0
        %473 = vmatprep.mubr.f32.mxu0 0.0
        %474 = vmatmul.mubr.f32.gmra.mrb[0].mxu0 %v261
        %v475 = vpop.f32.mrb[0].mxu0
        %v476 = vadd.f32 %v218, %v475
        %v477 = vpop.f32.mrb[0].mxu0
        %478 = vmatprep.mubr.f32.mxu0 0.0
        %479 = vmatmul.mubr.f32.gmra.mrb[0].mxu0 %v264
        %v480 = vpop.f32.mrb[0].mxu0
        %v481 = vadd.f32 %v218, %v480
        %v482 = vpop.f32.mrb[0].mxu0
        %483 = vmatprep.mubr.f32.mxu0 0.0
        %484 = vmatmul.mubr.f32.gmra.mrb[0].mxu0 %v267
        %v485 = vpop.f32.mrb[0].mxu0
        %v486 = vadd.f32 %v218, %v485
        %v487 = vpop.f32.mrb[0].mxu0
        %488 = vmatprep.mubr.f32.mxu0 0.0
        %489 = vmatmul.mubr.f32.gmra.mrb[0].mxu0 %v270
        %v490 = vpop.f32.mrb[0].mxu0
        %v491 = vadd.f32 %v218, %v490
        %v492 = vpop.f32.mrb[0].mxu0
        %493 = vmatprep.mubr.f32.mxu0 0.0
        %494 = vmatmul.mubr.f32.gmra.mrb[0].mxu0 %v273
        %v495 = vpop.f32.mrb[0].mxu0
        %v496 = vadd.f32 %v218, %v495
        %v497 = vpop.f32.mrb[0].mxu0
        %498 = vmatprep.mubr.f32.mxu0 0.0
        %499 = vmatmul.mubr.f32.gmra.mrb[0].mxu0 %v276
        %v500 = vpop.f32.mrb[0].mxu0
        %v501 = vadd.f32 %v218, %v500
        %v502 = vpop.f32.mrb[0].mxu0
        %503 = vmatprep.mubr.f32.mxu0 0.0
        %504 = vmatmul.mubr.f32.gmra.mrb[0].mxu0 %v279
        %v505 = vpop.f32.mrb[0].mxu0
        %v506 = vadd.f32 %v218, %v505
        %v507 = vpop.f32.mrb[0].mxu0
        %508 = vmatprep.mubr.f32.mxu0 0.0
        %509 = vmatmul.mubr.f32.gmra.mrb[0].mxu0 %v282
        %v510 = vpop.f32.mrb[0].mxu0
        %v511 = vadd.f32 %v218, %v510
        %v512 = vpop.f32.mrb[0].mxu0
        %513 = vmatprep.mubr.f32.mxu0 0.0
        %514 = vmatmul.mubr.f32.gmra.mrb[0].mxu0 %v285
        %v515 = vpop.f32.mrb[0].mxu0
        %v516 = vadd.f32 %v218, %v515
        %v517 = vpop.f32.mrb[0].mxu0
        %518 = vmatprep.mubr.f32.mxu0 0.0
        %519 = vmatmul.mubr.f32.gmra.mrb[0].mxu0 %v288
        %v520 = vpop.f32.mrb[0].mxu0
        %v521 = vadd.f32 %v218, %v520
        %v522 = vpop.f32.mrb[0].mxu0
        %523 = vmatprep.mubr.f32.mxu0 0.0
        %524 = vmatmul.mubr.f32.gmra.mrb[0].mxu0 %v291
        %v525 = vpop.f32.mrb[0].mxu0
        %v526 = vadd.f32 %v218, %v525
        %v527 = vpop.f32.mrb[0].mxu0
        %528 = vmatprep.mubr.f32.mxu0 0.0
        %529 = vmatmul.mubr.f32.gmra.mrb[0].mxu0 %v294
        %v530 = vpop.f32.mrb[0].mxu0
        %v531 = vadd.f32 %v218, %v530
        %v532 = vpop.f32.mrb[0].mxu0
        %533 = vdwg.mxu0
        %v534 = vxor.u32 %v411, 2147483648
        %v535 = vxor.u32 %v416, 2147483648
        %v536 = vxor.u32 %v421, 2147483648
        %v537 = vxor.u32 %v426, 2147483648
        %v538 = vxor.u32 %v431, 2147483648
        %v539 = vxor.u32 %v436, 2147483648
        %v540 = vxor.u32 %v441, 2147483648
        %v541 = vxor.u32 %v446, 2147483648
        %v542 = vxor.u32 %v451, 2147483648
        %v543 = vxor.u32 %v456, 2147483648
        %v544 = vxor.u32 %v461, 2147483648
        %v545 = vxor.u32 %v466, 2147483648
        %v546 = vxor.u32 %v471, 2147483648
        %v547 = vxor.u32 %v476, 2147483648
        %v548 = vxor.u32 %v481, 2147483648
        %v549 = vxor.u32 %v486, 2147483648
        %v550 = vxor.u32 %v491, 2147483648
        %v551 = vxor.u32 %v496, 2147483648
        %v552 = vxor.u32 %v501, 2147483648
        %v553 = vxor.u32 %v506, 2147483648
        %v554 = vxor.u32 %v511, 2147483648
        %v555 = vxor.u32 %v516, 2147483648
        %v556 = vxor.u32 %v521, 2147483648
        %v557 = vxor.u32 %v526, 2147483648
        %v558 = vxor.u32 %v531, 2147483648
        %v559 = vmul.f32 %v534, 1.442695
        %v560 = vpow.pop %v559
        %v561 = vmul.f32 %v535, 1.442695
        %v562 = vpow.pop %v561
        %v563 = vmul.f32 %v536, 1.442695
        %v564 = vpow.pop %v563
        %v565 = vmul.f32 %v537, 1.442695
        %v566 = vpow.pop %v565
        %v567 = vmul.f32 %v538, 1.442695
        %v568 = vpow.pop %v567
        %v569 = vmul.f32 %v539, 1.442695
        %v570 = vpow.pop %v569
        %v571 = vmul.f32 %v540, 1.442695
        %v572 = vpow.pop %v571
        %v573 = vmul.f32 %v541, 1.442695
        %v574 = vpow.pop %v573
        %v575 = vmul.f32 %v542, 1.442695
        %v576 = vpow.pop %v575
        %v577 = vmul.f32 %v543, 1.442695
        %v578 = vpow.pop %v577
        %v579 = vmul.f32 %v544, 1.442695
        %v580 = vpow.pop %v579
        %v581 = vmul.f32 %v545, 1.442695
        %v582 = vpow.pop %v581
        %v583 = vmul.f32 %v546, 1.442695
        %v584 = vpow.pop %v583
        %v585 = vmul.f32 %v547, 1.442695
        %v586 = vpow.pop %v585
        %v587 = vmul.f32 %v548, 1.442695
        %v588 = vpow.pop %v587
        %v589 = vmul.f32 %v549, 1.442695
        %v590 = vpow.pop %v589
        %v591 = vmul.f32 %v550, 1.442695
        %v592 = vpow.pop %v591
        %v593 = vmul.f32 %v551, 1.442695
        %v594 = vpow.pop %v593
        %v595 = vmul.f32 %v552, 1.442695
        %v596 = vpow.pop %v595
        %v597 = vmul.f32 %v553, 1.442695
        %v598 = vpow.pop %v597
        %v599 = vmul.f32 %v554, 1.442695
        %v600 = vpow.pop %v599
        %v601 = vmul.f32 %v555, 1.442695
        %v602 = vpow.pop %v601
        %v603 = vmul.f32 %v556, 1.442695
        %v604 = vpow.pop %v603
        %v605 = vmul.f32 %v557, 1.442695
        %v606 = vpow.pop %v605
        %v607 = vmul.f32 %v558, 1.442695
        %v608 = vpow.pop %v607
        %v609 = vadd.f32 %v560, 1.0
        %v610 = vadd.f32 %v562, 1.0
        %v611 = vadd.f32 %v564, 1.0
        %v612 = vadd.f32 %v566, 1.0
        %v613 = vadd.f32 %v568, 1.0
        %v614 = vadd.f32 %v570, 1.0
        %v615 = vadd.f32 %v572, 1.0
        %v616 = vadd.f32 %v574, 1.0
        %v617 = vadd.f32 %v576, 1.0
        %v618 = vadd.f32 %v578, 1.0
        %v619 = vadd.f32 %v580, 1.0
        %v620 = vadd.f32 %v582, 1.0
        %v621 = vadd.f32 %v584, 1.0
        %v622 = vadd.f32 %v586, 1.0
        %v623 = vadd.f32 %v588, 1.0
        %v624 = vadd.f32 %v590, 1.0
        %v625 = vadd.f32 %v592, 1.0
        %v626 = vadd.f32 %v594, 1.0
        %v627 = vadd.f32 %v596, 1.0
        %v628 = vadd.f32 %v598, 1.0
        %v629 = vadd.f32 %v600, 1.0
        %v630 = vadd.f32 %v602, 1.0
        %v631 = vadd.f32 %v604, 1.0
        %v632 = vadd.f32 %v606, 1.0
        %v633 = vadd.f32 %v608, 1.0
        %v634 = vrcp.pop %v609
        %v635 = vmul.f32 1.0, %v634
        %v636 = vrcp.pop %v610
        %v637 = vmul.f32 1.0, %v636
        %v638 = vrcp.pop %v611
        %v639 = vmul.f32 1.0, %v638
        %v640 = vrcp.pop %v612
        %v641 = vmul.f32 1.0, %v640
        %v642 = vrcp.pop %v613
        %v643 = vmul.f32 1.0, %v642
        %v644 = vrcp.pop %v614
        %v645 = vmul.f32 1.0, %v644
        %v646 = vrcp.pop %v615
        %v647 = vmul.f32 1.0, %v646
        %v648 = vrcp.pop %v616
        %v649 = vmul.f32 1.0, %v648
        %v650 = vrcp.pop %v617
        %v651 = vmul.f32 1.0, %v650
        %v652 = vrcp.pop %v618
        %v653 = vmul.f32 1.0, %v652
        %v654 = vrcp.pop %v619
        %v655 = vmul.f32 1.0, %v654
        %v656 = vrcp.pop %v620
        %v657 = vmul.f32 1.0, %v656
        %v658 = vrcp.pop %v621
        %v659 = vmul.f32 1.0, %v658
        %v660 = vrcp.pop %v622
        %v661 = vmul.f32 1.0, %v660
        %v662 = vrcp.pop %v623
        %v663 = vmul.f32 1.0, %v662
        %v664 = vrcp.pop %v624
        %v665 = vmul.f32 1.0, %v664
        %v666 = vrcp.pop %v625
        %v667 = vmul.f32 1.0, %v666
        %v668 = vrcp.pop %v626
        %v669 = vmul.f32 1.0, %v668
        %v670 = vrcp.pop %v627
        %v671 = vmul.f32 1.0, %v670
        %v672 = vrcp.pop %v628
        %v673 = vmul.f32 1.0, %v672
        %v674 = vrcp.pop %v629
        %v675 = vmul.f32 1.0, %v674
        %v676 = vrcp.pop %v630
        %v677 = vmul.f32 1.0, %v676
        %v678 = vrcp.pop %v631
        %v679 = vmul.f32 1.0, %v678
        %v680 = vrcp.pop %v632
        %v681 = vmul.f32 1.0, %v680
        %v682 = vrcp.pop %v633
        %v683 = vmul.f32 1.0, %v682
        %684 = vst [vmem:[%s164] sm:$0xff] %v635
        %685 = vst [vmem:[%s164 + $0x8] sm:$0xff] %v637
        %686 = vst [vmem:[%s164 + $0x10] sm:$0xff] %v639
        %687 = vst [vmem:[%s164 + $0x18] sm:$0xff] %v641
        %688 = vst [vmem:[%s164 + $0x20] sm:$0xff] %v643
        %689 = vst [vmem:[%s164 + $0x28] sm:$0xff] %v645
        %690 = vst [vmem:[%s164 + $0x30] sm:$0xff] %v647
        %691 = vst [vmem:[%s164 + $0x38] sm:$0xff] %v649
        %692 = vst [vmem:[%s164 + $0x40] sm:$0xff] %v651
        %693 = vst [vmem:[%s164 + $0x48] sm:$0xff] %v653
        %694 = vst [vmem:[%s164 + $0x50] sm:$0xff] %v655
        %695 = vst [vmem:[%s164 + $0x58] sm:$0xff] %v657
        %696 = vst [vmem:[%s164 + $0x60] sm:$0xff] %v659
        %697 = vst [vmem:[%s164 + $0x68] sm:$0xff] %v661
        %698 = vst [vmem:[%s164 + $0x70] sm:$0xff] %v663
        %699 = vst [vmem:[%s164 + $0x78] sm:$0xff] %v665
        %700 = vst [vmem:[%s164 + $0x80] sm:$0xff] %v667
        %701 = vst [vmem:[%s164 + $0x88] sm:$0xff] %v669
        %702 = vst [vmem:[%s164 + $0x90] sm:$0xff] %v671
        %703 = vst [vmem:[%s164 + $0x98] sm:$0xff] %v673
        %704 = vst [vmem:[%s164 + $0xa0] sm:$0xff] %v675
        %705 = vst [vmem:[%s164 + $0xa8] sm:$0xff] %v677
        %706 = vst [vmem:[%s164 + $0xb0] sm:$0xff] %v679
        %707 = vst [vmem:[%s164 + $0xb8] sm:$0xff] %v681
        %708 = vst [vmem:[%s164 + $0xc0] sm:$0xff] %v683
        %s709 = sand.u32 %s93, 1
        %s710 = scalar_lea.sflag [#allocation3], %s709
        %s711 = sand.u32 %s93, 1
        %s712 = smul.addr %s711, 200
        %s713 = scalar_lea.vmem [#allocation2], %s712
        // Predicated region
        $region33: #{tpu_custom_call.1} parent=31 // pred_check
          %p714 = pneg %p103
        $region34: #{tpu_custom_call.1} parent=31 // pred_check_branch
          %716 = sbr.rel (%p714) target = $region36
        $region35: #{tpu_custom_call.1} parent=31 // pred_region
          %s717 = smul.u32 25, %s17
          %s719 = ssub.s32 3200, 3200
          %720 = vsyncadd %s710, %s719
          %s721 = smul.addr %s717, 128
          %s722 = scalar_lea.hbm %s3, %s721
          %s723 = sshll.u32 %s713, 4
          %s724 = int_to_ptr.vmem [resolvable:$true] %s723
          %729 = dma.vmem_to_hbm [thread:$0]  %s724, 3200, %s722, %s710, 128, 128, 8
        $region36: #{tpu_custom_call.1} parent=31 // pred_fallthru
          _
      $region32: #{tpu_custom_call.1} parent=5 // pred_fallthru
        _
      %p730 = scmp.le.s32.totalorder 2, %s12
      // Predicated region
      $region37: #{tpu_custom_call.1} parent=5 // pred_check
        %p731 = pneg %p730
      $region38: #{tpu_custom_call.1} parent=5 // pred_check_branch
        %733 = sbr.rel (%p731) target = $region40
      $region39: #{tpu_custom_call.1} parent=5 // pred_region
        %s734 = ssub.s32 %s12, 2
        // Predicated region
        $region41: #{tpu_custom_call.1} parent=39 // pred_check
          %p735 = pneg %p109
        $region42: #{tpu_custom_call.1} parent=39 // pred_check_branch
          %737 = sbr.rel (%p735) target = $region44
        $region43: #{tpu_custom_call.1} parent=39 // pred_region
          %s738 = sand.u32 %s94, 1
          %s739 = scalar_lea.sflag [#allocation3], %s738
          %s740 = sand.u32 %s94, 1
          %s741 = smul.addr %s740, 200
          %s742 = scalar_lea.vmem [#allocation2], %s741
          %743 = dma.done %s739, 3200
        $region44: #{tpu_custom_call.1} parent=39 // pred_fallthru
          _
      $region40: #{tpu_custom_call.1} parent=5 // pred_fallthru
        _
    $region6: #{tpu_custom_call.1} parent=1 // loop_footer
      %s16 = sadd.s32 1, %s12
    $region7: #{tpu_custom_call.1} parent=1 // loop_footer_branch
      %11 = sbr.rel target = $region3
    $region8: #{tpu_custom_call.1} parent=1 // loop_exit
      _
    %744 = vsyncpa [#allocation3], 1
    %s745 = scalar_lea.sflag [#allocation3], 1
    %746 = vsyncpa %s745, 1

</llo_original>
